<compile_context>
chip_gen: v5e
topology: v5e:2x2
jax: 0.10.0
libtpu: 0.0.40
codegen_flags: <defaults>
</compile_context>

<pallas_src>
import functools

import jax
import jax.numpy as jnp
from jax.experimental import pallas as pl
from jax.experimental.pallas import tpu as pltpu

LANE = 128


def _round_up(x: int, m: int) -> int:
    return ((x + m - 1) // m) * m


def _pad2(a, shape):
    """Zero-pad a 2-D array up to `shape` (semantics-preserving for this MLP)."""
    return jnp.pad(a, ((0, shape[0] - a.shape[0]), (0, shape[1] - a.shape[1])))


# ---------------------------------------------------------------------------
# Kernels
# ---------------------------------------------------------------------------
def _mlp_body(x, w1, b1, w2, b2, w3, b3):
    """fc1 -> relu -> fc2 -> relu + residual -> fc3 on lane-padded weights."""
    h1 = jnp.dot(x.astype(w1.dtype), w1, preferred_element_type=jnp.float32) + b1
    h1 = jnp.maximum(h1, 0.0)                                   # (TB, HP)
    h2 = jnp.dot(h1.astype(w2.dtype), w2, preferred_element_type=jnp.float32) + b2
    h2 = jnp.maximum(h2, 0.0) + h1                              # (TB, HP)
    return jnp.dot(h2.astype(w3.dtype), w3, preferred_element_type=jnp.float32) + b3


def policy_logits_kernel(x_ref, w1_ref, b1_ref, w2_ref, b2_ref, w3_ref, b3_ref,
                         o_ref):
    out_w = o_ref.shape[-1]
    logits = _mlp_body(x_ref[...], w1_ref[...], b1_ref[...], w2_ref[...],
                       b2_ref[...], w3_ref[...], b3_ref[...])   # (TB, NP)
    o_ref[...] = logits[:, :out_w].astype(o_ref.dtype)          # only real lanes hit HBM


def policy_probs_kernel(x_ref, m_ref, w1_ref, b1_ref, w2_ref, b2_ref, w3_ref,
                        b3_ref, o_ref):
    """Fused forward + masked_softmax (the `dists` path): probs, not padded logits,
    are the only per-row data written back to HBM."""
    out_w = o_ref.shape[-1]
    logits = _mlp_body(x_ref[...], w1_ref[...], b1_ref[...], w2_ref[...],
                       b2_ref[...], w3_ref[...], b3_ref[...])[:, :out_w]
    masked = jnp.where(m_ref[...] >= 0.99999, logits, -jnp.inf)
    mx = jnp.max(masked, axis=-1, keepdims=True)
    e = jnp.exp(masked - mx)
    o_ref[...] = (e / jnp.sum(e, axis=-1, keepdims=True)).astype(o_ref.dtype)


# ---------------------------------------------------------------------------
# Wrappers
# ---------------------------------------------------------------------------
def _pick_tile(B: int, block_batch: int) -> int:
    """Batch tile: multiple of 8, capped, with >=2 grid steps for megacore."""
    block_batch = max(8, _round_up(block_batch, 8))
    tb = min(_round_up(B, 8), block_batch)
    if B >= 16 and pl.cdiv(B, tb) < 2:        # split so v7x can use both TCs
        tb = _round_up(pl.cdiv(B, 2), 8)
    return tb


def _build_specs(TB, D, HP, NP, out_dim, with_mask):
    in_specs = [pl.BlockSpec((TB, D), lambda i: (i, 0))]            # x: streamed
    if with_mask:
        in_specs.append(pl.BlockSpec((TB, out_dim), lambda i: (i, 0)))
    in_specs += [                                                   # weights: resident
        pl.BlockSpec((D, HP), lambda i: (0, 0)),
        pl.BlockSpec((1, HP), lambda i: (0, 0)),
        pl.BlockSpec((HP, HP), lambda i: (0, 0)),
        pl.BlockSpec((1, HP), lambda i: (0, 0)),
        pl.BlockSpec((HP, NP), lambda i: (0, 0)),
        pl.BlockSpec((1, NP), lambda i: (0, 0)),
    ]
    out_spec = pl.BlockSpec((TB, out_dim), lambda i: (i, 0))
    return in_specs, out_spec


def _run(kernel, x, mask, params, out_dim, block_batch):
    w1p, b1p, w2p, b2p, w3p, b3p = params
    B, D = x.shape
    HP = w1p.shape[1]
    NP = w3p.shape[1]
    TB = _pick_tile(B, block_batch)
    grid = (pl.cdiv(B, TB),)

    in_specs, out_spec = _build_specs(TB, D, HP, NP, out_dim, mask is not None)
    operands = (x,) + (() if mask is None else (mask,)) + params

    flops = 2 * B * (D * HP + HP * HP + HP * NP)
    bytes_accessed = (x.size * x.dtype.itemsize
                      + sum(a.size * a.dtype.itemsize for a in params)
                      + B * out_dim * 4)
    cost = pl.CostEstimate(flops=flops, transcendentals=0,
                           bytes_accessed=bytes_accessed)

    return pl.pallas_call(
        kernel,
        out_shape=jax.ShapeDtypeStruct((B, out_dim), jnp.float32),
        grid_spec=pltpu.PrefetchScalarGridSpec(
            num_scalar_prefetch=0,
            grid=grid,
            in_specs=in_specs,
            out_specs=out_spec,
        ),
        compiler_params=pltpu.CompilerParams(
            dimension_semantics=("parallel",),   # batch tiles shard across TCs on v7x
        ),
        cost_estimate=cost,
    )(*operands)


@functools.partial(jax.jit, static_argnames=("out_dim", "block_batch"))
def policy_forward(x, w1p, b1p, w2p, b2p, w3p, b3p, *, out_dim, block_batch=4096):
    """Forward pass of Policy: returns logits of shape (B, out_dim)."""
    return _run(policy_logits_kernel, x, None,
                (w1p, b1p, w2p, b2p, w3p, b3p), out_dim, block_batch)


@functools.partial(jax.jit, static_argnames=("out_dim", "block_batch"))
def policy_probs_forward(x, masks, w1p, b1p, w2p, b2p, w3p, b3p, *, out_dim,
                         block_batch=4096):
    """Fused forward + masked_softmax: returns probs of shape (B, out_dim)."""
    return _run(policy_probs_kernel, x, masks,
                (w1p, b1p, w2p, b2p, w3p, b3p), out_dim, block_batch)


# ---------------------------------------------------------------------------
# Parameters
# ---------------------------------------------------------------------------
def make_params(key, input_dim, hidden_dim=64):
    """Deterministic init mimicking PyTorch Linear (uniform +/- 1/sqrt(fan_in))."""
    ks = jax.random.split(key, 6)

    def linear(kw, kb, fan_in, fan_out):
        bound = 1.0 / jnp.sqrt(fan_in)
        w = jax.random.uniform(kw, (fan_in, fan_out), jnp.float32, -bound, bound)
        b = jax.random.uniform(kb, (1, fan_out), jnp.float32, -bound, bound)
        return w, b

    w1, b1 = linear(ks[0], ks[1], input_dim, hidden_dim)
    w2, b2 = linear(ks[2], ks[3], hidden_dim, hidden_dim)
    w3, b3 = linear(ks[4], ks[5], hidden_dim, input_dim + 1)
    return w1, b1, w2, b2, w3, b3


def prepare_params(raw_params, use_bf16=False):
    """One-time lane-padding (+ optional bf16 cast) of weights/biases, done
    OUTSIDE the per-call jitted path so no pad/cast ops run per forward."""
    w1, b1, w2, b2, w3, b3 = raw_params
    D, H = w1.shape
    OUT = w3.shape[1]
    HP = _round_up(H, LANE)
    NP = _round_up(OUT, LANE)
    w1p, b1p = _pad2(w1, (D, HP)), _pad2(b1, (1, HP))
    w2p, b2p = _pad2(w2, (HP, HP)), _pad2(b2, (1, HP))
    w3p, b3p = _pad2(w3, (HP, NP)), _pad2(b3, (1, NP))
    if use_bf16:
        # Weights bf16 for the MXU; biases / elementwise stay f32, accumulation
        # stays f32 via preferred_element_type.  Tolerance ~1e-2, not 1e-5.
        w1p, w2p, w3p = (w.astype(jnp.bfloat16) for w in (w1p, w2p, w3p))
    return (w1p, b1p, w2p, b2p, w3p, b3p)


# ---------------------------------------------------------------------------
# Plain-JAX references
# ---------------------------------------------------------------------------
def policy_forward_ref(x, w1, b1, w2, b2, w3, b3):
    h1 = jax.nn.relu(x @ w1 + b1)
    h2 = jax.nn.relu(h1 @ w2 + b2) + h1
    return h2 @ w3 + b3


def masked_softmax_ref(logits, masks):
    masked = jnp.where(masks >= 0.99999, logits, -jnp.inf)
    return jax.nn.softmax(masked, axis=-1)


# TODO(synk): Categorical sampling / log_prob / entropy (select_action,
# log_probs) remain plain-JAX post-processing on the fused probs output.

if __name__ == "__main__":
    key = jax.random.PRNGKey(0)
    k_x, k_p, k_m = jax.random.split(key, 3)

    input_dim = 16                 # board_size * board_size with board_size = 4
    out_dim = input_dim + 1
    batch = 8

    raw = make_params(k_p, input_dim)
    params_f32 = prepare_params(raw)                    # padded once, outside jit
    params_bf16 = prepare_params(raw, use_bf16=True)

    # --- logits, f32, tiny batch (single fused grid step) -------------------
    x = jax.random.normal(k_x, (batch, input_dim), jnp.float32)
    out = policy_forward(x, *params_f32, out_dim=out_dim)
    jax.block_until_ready(out)
    ref = policy_forward_ref(x, *raw)
    assert out.shape == (batch, out_dim)
    assert jnp.allclose(out, ref, atol=1e-5, rtol=1e-5), "mismatch vs ref (B=8)"

    # --- logits, multi-tile grid (>=2 steps, partial last tile, no x pad) ---
    x2 = jax.random.normal(jax.random.PRNGKey(1), (40, input_dim), jnp.float32)
    out2 = policy_forward(x2, *params_f32, out_dim=out_dim)
    jax.block_until_ready(out2)
    ref2 = policy_forward_ref(x2, *raw)
    assert out2.shape == (40, out_dim)
    assert jnp.allclose(out2, ref2, atol=1e-5, rtol=1e-5), "mismatch vs ref (B=40)"

    # --- bf16 MXU path (f32 accumulation, relaxed tolerance) ----------------
    out_bf = policy_forward(x2, *params_bf16, out_dim=out_dim)
    jax.block_until_ready(out_bf)
    assert jnp.allclose(out_bf, ref2, atol=5e-2, rtol=5e-2), "mismatch vs ref (bf16)"

    # --- fused forward + masked_softmax (dists / select_action path) --------
    masks = (jax.random.uniform(k_m, (40, out_dim)) > 0.3).astype(jnp.float32)
    masks = masks.at[:, 0].set(1.0)             # guarantee >=1 legal action per row
    probs = policy_probs_forward(x2, masks, *params_f32, out_dim=out_dim)
    jax.block_until_ready(probs)
    ref_probs = masked_softmax_ref(ref2, masks)
    assert probs.shape == (40, out_dim)
    assert jnp.allclose(probs, ref_probs, atol=1e-4, rtol=1e-4), "mismatch vs masked_softmax"
    assert jnp.allclose(probs.sum(-1), 1.0, atol=1e-4), "probs do not sum to 1"

    print("KERNEL_OK")
</pallas_src>

<mosaic_0001>
module attributes {stable_mosaic.version = 11 : i64} {
  func.func @policy_logits_kernel(%arg0: i32, %arg1: memref<8x16xf32, #tpu.memory_space<vmem>>, %arg2: memref<16x128xf32, #tpu.memory_space<vmem>>, %arg3: memref<1x128xf32, #tpu.memory_space<vmem>>, %arg4: memref<128x128xf32, #tpu.memory_space<vmem>>, %arg5: memref<1x128xf32, #tpu.memory_space<vmem>>, %arg6: memref<128x128xf32, #tpu.memory_space<vmem>>, %arg7: memref<1x128xf32, #tpu.memory_space<vmem>>, %arg8: memref<8x17xf32, #tpu.memory_space<vmem>>) attributes {dimension_semantics = [#tpu.dimension_semantics<parallel>], iteration_bounds = array<i64: 1>, scalar_prefetch = 0 : i64, scratch_operands = 0 : i64, tpu.core_type = #tpu.core_type<tc>, window_params = [{transform_indices = @transform_0, window_bounds = array<i64: 8, 16>}, {pipeline_mode = #tpu.pipeline_mode<synchronous>, transform_indices = @transform_1, window_bounds = array<i64: 16, 128>}, {pipeline_mode = #tpu.pipeline_mode<synchronous>, transform_indices = @transform_2, window_bounds = array<i64: 1, 128>}, {pipeline_mode = #tpu.pipeline_mode<synchronous>, transform_indices = @transform_3, window_bounds = array<i64: 128, 128>}, {pipeline_mode = #tpu.pipeline_mode<synchronous>, transform_indices = @transform_4, window_bounds = array<i64: 1, 128>}, {pipeline_mode = #tpu.pipeline_mode<synchronous>, transform_indices = @transform_5, window_bounds = array<i64: 128, 128>}, {pipeline_mode = #tpu.pipeline_mode<synchronous>, transform_indices = @transform_6, window_bounds = array<i64: 1, 128>}, {transform_indices = @transform_7, window_bounds = array<i64: 8, 17>}]} {
    %c0 = arith.constant 0 : index
    %c0_0 = arith.constant 0 : index
    %0 = vector.load %arg1[%c0, %c0_0] : memref<8x16xf32, #tpu.memory_space<vmem>>, vector<8x16xf32>
    %c0_1 = arith.constant 0 : index
    %c0_2 = arith.constant 0 : index
    %1 = vector.load %arg2[%c0_1, %c0_2] : memref<16x128xf32, #tpu.memory_space<vmem>>, vector<16x128xf32>
    %c0_3 = arith.constant 0 : index
    %c0_4 = arith.constant 0 : index
    %2 = vector.load %arg3[%c0_3, %c0_4] : memref<1x128xf32, #tpu.memory_space<vmem>>, vector<1x128xf32>
    %c0_5 = arith.constant 0 : index
    %c0_6 = arith.constant 0 : index
    %3 = vector.load %arg4[%c0_5, %c0_6] : memref<128x128xf32, #tpu.memory_space<vmem>>, vector<128x128xf32>
    %c0_7 = arith.constant 0 : index
    %c0_8 = arith.constant 0 : index
    %4 = vector.load %arg5[%c0_7, %c0_8] : memref<1x128xf32, #tpu.memory_space<vmem>>, vector<1x128xf32>
    %c0_9 = arith.constant 0 : index
    %c0_10 = arith.constant 0 : index
    %5 = vector.load %arg6[%c0_9, %c0_10] : memref<128x128xf32, #tpu.memory_space<vmem>>, vector<128x128xf32>
    %c0_11 = arith.constant 0 : index
    %c0_12 = arith.constant 0 : index
    %6 = vector.load %arg7[%c0_11, %c0_12] : memref<1x128xf32, #tpu.memory_space<vmem>>, vector<1x128xf32>
    %cst = arith.constant dense<0.000000e+00> : vector<8x128xf32>
    %7 = tpu.matmul %0, %1, %cst {dimension_numbers = #tpu.dot_dimension_numbers<[1], [0], [0], [1], [0, 0, 1, 1], [], []>} : vector<8x16xf32>, vector<16x128xf32>, vector<8x128xf32> -> vector<8x128xf32>
    %8 = vector.broadcast %2 : vector<1x128xf32> to vector<8x128xf32>
    %9 = arith.addf %7, %8 : vector<8x128xf32>
    %cst_13 = arith.constant 0.000000e+00 : f32
    %10 = vector.broadcast %cst_13 : f32 to vector<8x128xf32>
    %11 = arith.maximumf %9, %10 : vector<8x128xf32>
    %cst_14 = arith.constant dense<0.000000e+00> : vector<8x128xf32>
    %12 = tpu.matmul %11, %3, %cst_14 {dimension_numbers = #tpu.dot_dimension_numbers<[1], [0], [0], [1], [0, 0, 1, 1], [], []>} : vector<8x128xf32>, vector<128x128xf32>, vector<8x128xf32> -> vector<8x128xf32>
    %13 = vector.broadcast %4 : vector<1x128xf32> to vector<8x128xf32>
    %14 = arith.addf %12, %13 : vector<8x128xf32>
    %cst_15 = arith.constant 0.000000e+00 : f32
    %15 = vector.broadcast %cst_15 : f32 to vector<8x128xf32>
    %16 = arith.maximumf %14, %15 : vector<8x128xf32>
    %17 = arith.addf %16, %11 : vector<8x128xf32>
    %cst_16 = arith.constant dense<0.000000e+00> : vector<8x128xf32>
    %18 = tpu.matmul %17, %5, %cst_16 {dimension_numbers = #tpu.dot_dimension_numbers<[1], [0], [0], [1], [0, 0, 1, 1], [], []>} : vector<8x128xf32>, vector<128x128xf32>, vector<8x128xf32> -> vector<8x128xf32>
    %19 = vector.broadcast %6 : vector<1x128xf32> to vector<8x128xf32>
    %20 = arith.addf %18, %19 : vector<8x128xf32>
    %21 = vector.extract_strided_slice %20 {offsets = [0, 0], sizes = [8, 17], strides = [1, 1]} : vector<8x128xf32> to vector<8x17xf32>
    %c0_17 = arith.constant 0 : index
    %c0_18 = arith.constant 0 : index
    %22 = vector.load %arg8[%c0_17, %c0_18] : memref<8x17xf32, #tpu.memory_space<vmem>>, vector<8x17xf32>
    tpu.vector_store %arg8[%c0_17, %c0_18], %21 {strides = array<i32>} : memref<8x17xf32, #tpu.memory_space<vmem>>, vector<8x17xf32>,
    return
  }
  func.func @transform_0(%arg0: i32) -> (i32, i32) {
    %c0_i32 = arith.constant 0 : i32
    %c0_i32_0 = arith.constant 0 : i32
    return %arg0, %c0_i32 : i32, i32
  }
  func.func @transform_1(%arg0: i32) -> (i32, i32) {
    %c0_i32 = arith.constant 0 : i32
    %c0_i32_0 = arith.constant 0 : i32
    %c0_i32_1 = arith.constant 0 : i32
    return %c0_i32, %c0_i32_0 : i32, i32
  }
  func.func @transform_2(%arg0: i32) -> (i32, i32) {
    %c0_i32 = arith.constant 0 : i32
    %c0_i32_0 = arith.constant 0 : i32
    %c0_i32_1 = arith.constant 0 : i32
    return %c0_i32, %c0_i32_0 : i32, i32
  }
  func.func @transform_3(%arg0: i32) -> (i32, i32) {
    %c0_i32 = arith.constant 0 : i32
    %c0_i32_0 = arith.constant 0 : i32
    %c0_i32_1 = arith.constant 0 : i32
    return %c0_i32, %c0_i32_0 : i32, i32
  }
  func.func @transform_4(%arg0: i32) -> (i32, i32) {
    %c0_i32 = arith.constant 0 : i32
    %c0_i32_0 = arith.constant 0 : i32
    %c0_i32_1 = arith.constant 0 : i32
    return %c0_i32, %c0_i32_0 : i32, i32
  }
  func.func @transform_5(%arg0: i32) -> (i32, i32) {
    %c0_i32 = arith.constant 0 : i32
    %c0_i32_0 = arith.constant 0 : i32
    %c0_i32_1 = arith.constant 0 : i32
    return %c0_i32, %c0_i32_0 : i32, i32
  }
  func.func @transform_6(%arg0: i32) -> (i32, i32) {
    %c0_i32 = arith.constant 0 : i32
    %c0_i32_0 = arith.constant 0 : i32
    %c0_i32_1 = arith.constant 0 : i32
    return %c0_i32, %c0_i32_0 : i32, i32
  }
  func.func @transform_7(%arg0: i32) -> (i32, i32) {
    %c0_i32 = arith.constant 0 : i32
    %c0_i32_0 = arith.constant 0 : i32
    return %arg0, %c0_i32 : i32, i32
  }
}

</mosaic_0001>

<llo_original>
// kernel: policy_forward.1
$region0: #{policy_forward.1}
  #allocation0 [shape = 'u32[]', space=smem, size = 0x4, offset = 0x4, fixed_abs, tag = 'smem constant byte address 0x4 - core index']
  #allocation1 [shape = 'u32[72,128]{1,0:T(1,128)}', space=vmem, size = 0x9000, scoped, tag = 'internal scratch']
  %s0 = inlined_call_operand.hbm [shape: f32[8,16], index: 0, kind: input, shape index: {}]
  %s1 = inlined_call_operand.hbm [shape: f32[16,128], index: 1, kind: input, shape index: {}]
  %s2 = inlined_call_operand.vmem [shape: f32[1,128], index: 2, kind: input, shape index: {}]
  %s3 = inlined_call_operand.hbm [shape: f32[128,128], index: 3, kind: input, shape index: {}]
  %s4 = inlined_call_operand.vmem [shape: f32[1,128], index: 4, kind: input, shape index: {}]
  %s5 = inlined_call_operand.hbm [shape: f32[128,128], index: 5, kind: input, shape index: {}]
  %s6 = inlined_call_operand.vmem [shape: f32[1,128], index: 6, kind: input, shape index: {}]
  %s7 = inlined_call_operand.hbm [shape: f32[8,17], index: 7, kind: output, shape index: {}]
  %s8 = sld [smem:[#allocation0]]
  $region54: #{policy_forward.1} parent=0
    _
  %s10 = ssub.s32 1, %s8
  %s11 = scalar_select 0, %s10, %s8
  $region1: #{policy_forward.1} parent=0
    #allocation2 [shape = 'u8[4096]{0}', space=vmem, size = 0x1000, scoped, tag = 'input window, operand 0, single buffered']
    #allocation3 [shape = 's32[1]{0}', space=sflag, size = 0x4, scoped, tag = 'scoped memory for policy_forward.1']
    #allocation4 [shape = 's32[1]{0}', space=sflag, size = 0x4, scoped, tag = 'scoped memory for policy_forward.1']
    #allocation5 [shape = 'u8[8192]{0}', space=vmem, size = 0x2000, scoped, tag = 'input window, operand 1, single buffered']
    #allocation6 [shape = 's32[1]{0}', space=sflag, size = 0x4, scoped, tag = 'scoped memory for policy_forward.1']
    #allocation7 [shape = 'u8[65536]{0}', space=vmem, size = 0x10000, scoped, tag = 'input window, operand 3, single buffered']
    #allocation8 [shape = 'u8[65536]{0}', space=vmem, size = 0x10000, scoped, tag = 'input window, operand 5, single buffered']
    #allocation9 [shape = 's32[1]{0}', space=sflag, size = 0x4, scoped, tag = 'scoped memory for policy_forward.1']
    #allocation10 [shape = 'u8[4096]{0}', space=vmem, size = 0x1000, scoped, tag = 'output window, operand 0, single buffered']
    %12 = vsyncpa [#allocation3], 0
    %13 = vsyncpa [#allocation6], 0
    %14 = vsyncpa [#allocation9], 0
    %15 = vsyncpa [#allocation4], 0
    // Predicated region
    $region2: #{policy_forward.1} parent=1 // pred_check
      _
    $region3: #{policy_forward.1} parent=1 // pred_check_branch
      %17 = sbr.rel (0) target = $region5
    $region4: #{policy_forward.1} parent=1 // pred_region
      %19 = vsyncadd [#allocation3], 0
      %s21 = sshll.u32 %s0, 4
      %s22 = int_to_ptr.hbm [resolvable:$true] %s21
      %s23 = sshll.u32 [#allocation2], 4
      %s24 = int_to_ptr.vmem [resolvable:$true] %s23
      %26 = dma.hbm_to_vmem [thread:$0]  %s22, 128, %s24, [#allocation3]
    $region5: #{policy_forward.1} parent=1 // pred_fallthru
      _
    // Predicated region
    $region6: #{policy_forward.1} parent=1 // pred_check
      _
    $region7: #{policy_forward.1} parent=1 // pred_check_branch
      %28 = sbr.rel (0) target = $region9
    $region8: #{policy_forward.1} parent=1 // pred_region
      %30 = vsyncadd [#allocation6], 0
      %s31 = sshll.u32 %s1, 4
      %s32 = int_to_ptr.hbm [resolvable:$true] %s31
      %s33 = sshll.u32 [#allocation5], 4
      %s34 = int_to_ptr.vmem [resolvable:$true] %s33
      %39 = dma.hbm_to_vmem [thread:$0]  %s32, 256, %s34, [#allocation6], 128, 128, 8
    $region9: #{policy_forward.1} parent=1 // pred_fallthru
      _
    // Predicated region
    $region10: #{policy_forward.1} parent=1 // pred_check
      _
    $region11: #{policy_forward.1} parent=1 // pred_check_branch
      %41 = sbr.rel (0) target = $region13
    $region12: #{policy_forward.1} parent=1 // pred_region
      _
    $region13: #{policy_forward.1} parent=1 // pred_fallthru
      _
    // Predicated region
    $region14: #{policy_forward.1} parent=1 // pred_check
      _
    $region15: #{policy_forward.1} parent=1 // pred_check_branch
      %43 = sbr.rel (0) target = $region17
    $region16: #{policy_forward.1} parent=1 // pred_region
      %45 = vsyncadd [#allocation6], 0
      %s46 = sshll.u32 %s3, 4
      %s47 = int_to_ptr.hbm [resolvable:$true] %s46
      %s48 = sshll.u32 [#allocation7], 4
      %s49 = int_to_ptr.vmem [resolvable:$true] %s48
      %54 = dma.hbm_to_vmem [thread:$0]  %s47, 2048, %s49, [#allocation6], 128, 128, 8
    $region17: #{policy_forward.1} parent=1 // pred_fallthru
      _
    // Predicated region
    $region18: #{policy_forward.1} parent=1 // pred_check
      _
    $region19: #{policy_forward.1} parent=1 // pred_check_branch
      %56 = sbr.rel (0) target = $region21
    $region20: #{policy_forward.1} parent=1 // pred_region
      _
    $region21: #{policy_forward.1} parent=1 // pred_fallthru
      _
    // Predicated region
    $region22: #{policy_forward.1} parent=1 // pred_check
      _
    $region23: #{policy_forward.1} parent=1 // pred_check_branch
      %58 = sbr.rel (0) target = $region25
    $region24: #{policy_forward.1} parent=1 // pred_region
      %60 = vsyncadd [#allocation9], 0
      %s61 = sshll.u32 %s5, 4
      %s62 = int_to_ptr.hbm [resolvable:$true] %s61
      %s63 = sshll.u32 [#allocation8], 4
      %s64 = int_to_ptr.vmem [resolvable:$true] %s63
      %69 = dma.hbm_to_vmem [thread:$0]  %s62, 2048, %s64, [#allocation9], 128, 128, 8
    $region25: #{policy_forward.1} parent=1 // pred_fallthru
      _
    // Predicated region
    $region26: #{policy_forward.1} parent=1 // pred_check
      _
    $region27: #{policy_forward.1} parent=1 // pred_check_branch
      %71 = sbr.rel (0) target = $region29
    $region28: #{policy_forward.1} parent=1 // pred_region
      _
    $region29: #{policy_forward.1} parent=1 // pred_fallthru
      _
    // Predicated region
    $region30: #{policy_forward.1} parent=1 // pred_check
      _
    $region31: #{policy_forward.1} parent=1 // pred_check_branch
      %73 = sbr.rel (0) target = $region33
    $region32: #{policy_forward.1} parent=1 // pred_region
      %75 = dma.done [#allocation3], 128
    $region33: #{policy_forward.1} parent=1 // pred_fallthru
      _
    // Predicated region
    $region34: #{policy_forward.1} parent=1 // pred_check
      _
    $region35: #{policy_forward.1} parent=1 // pred_check_branch
      %77 = sbr.rel (0) target = $region37
    $region36: #{policy_forward.1} parent=1 // pred_region
      %79 = dma.done [#allocation6], 256
    $region37: #{policy_forward.1} parent=1 // pred_fallthru
      _
    // Predicated region
    $region38: #{policy_forward.1} parent=1 // pred_check
      _
    $region39: #{policy_forward.1} parent=1 // pred_check_branch
      %81 = sbr.rel (0) target = $region41
    $region40: #{policy_forward.1} parent=1 // pred_region
      %83 = dma.done [#allocation6], 2048
    $region41: #{policy_forward.1} parent=1 // pred_fallthru
      _
    // Predicated region
    $region42: #{policy_forward.1} parent=1 // pred_check
      _
    $region43: #{policy_forward.1} parent=1 // pred_check_branch
      %85 = sbr.rel (0) target = $region45
    $region44: #{policy_forward.1} parent=1 // pred_region
      %87 = dma.done [#allocation9], 2048
    $region45: #{policy_forward.1} parent=1 // pred_fallthru
      _
    %v88 = vld [vmem:[#allocation2] sm:$0xff]
    %v89 = vld [vmem:[#allocation5] sm:$0xff]
    %v90 = vld [vmem:[#allocation5 + $0x8] sm:$0xff]
    %v91 = vld [vmem:[%s2] sm:$0x1]
    %v92 = vld [vmem:[#allocation7] sm:$0xff]
    %v93 = vld [vmem:[#allocation7 + $0x8] sm:$0xff]
    %v94 = vld [vmem:[#allocation7 + $0x10] sm:$0xff]
    %v95 = vld [vmem:[#allocation7 + $0x18] sm:$0xff]
    %v96 = vld [vmem:[#allocation7 + $0x20] sm:$0xff]
    %v97 = vld [vmem:[#allocation7 + $0x28] sm:$0xff]
    %v98 = vld [vmem:[#allocation7 + $0x30] sm:$0xff]
    %v99 = vld [vmem:[#allocation7 + $0x38] sm:$0xff]
    %v100 = vld [vmem:[#allocation7 + $0x40] sm:$0xff]
    %v101 = vld [vmem:[#allocation7 + $0x48] sm:$0xff]
    %v102 = vld [vmem:[#allocation7 + $0x50] sm:$0xff]
    %v103 = vld [vmem:[#allocation7 + $0x58] sm:$0xff]
    %v104 = vld [vmem:[#allocation7 + $0x60] sm:$0xff]
    %v105 = vld [vmem:[#allocation7 + $0x68] sm:$0xff]
    %v106 = vld [vmem:[#allocation7 + $0x70] sm:$0xff]
    %v107 = vld [vmem:[#allocation7 + $0x78] sm:$0xff]
    %v108 = vld [vmem:[%s4] sm:$0x1]
    %v109 = vld [vmem:[#allocation8] sm:$0xff]
    %v110 = vld [vmem:[#allocation8 + $0x8] sm:$0xff]
    %v111 = vld [vmem:[#allocation8 + $0x10] sm:$0xff]
    %v112 = vld [vmem:[#allocation8 + $0x18] sm:$0xff]
    %v113 = vld [vmem:[#allocation8 + $0x20] sm:$0xff]
    %v114 = vld [vmem:[#allocation8 + $0x28] sm:$0xff]
    %v115 = vld [vmem:[#allocation8 + $0x30] sm:$0xff]
    %v116 = vld [vmem:[#allocation8 + $0x38] sm:$0xff]
    %v117 = vld [vmem:[#allocation8 + $0x40] sm:$0xff]
    %v118 = vld [vmem:[#allocation8 + $0x48] sm:$0xff]
    %v119 = vld [vmem:[#allocation8 + $0x50] sm:$0xff]
    %v120 = vld [vmem:[#allocation8 + $0x58] sm:$0xff]
    %v121 = vld [vmem:[#allocation8 + $0x60] sm:$0xff]
    %v122 = vld [vmem:[#allocation8 + $0x68] sm:$0xff]
    %v123 = vld [vmem:[#allocation8 + $0x70] sm:$0xff]
    %v124 = vld [vmem:[#allocation8 + $0x78] sm:$0xff]
    %v125 = vld [vmem:[%s6] sm:$0x1]
    %v127 = vperm.slane %v91, 0
    %vm129 = vcmask 130048
    %v131 = vsel %vm129, %v88, 0
    %133 = vmatpush.msra.mxu0 0.0
    %134 = vmatpush.msra.mxu0 0.0
    %135 = vmatpush.msra.mxu0 0.0
    %136 = vmatpush.msra.mxu0 0.0
    %137 = vmatpush.msra.mxu0 0.0
    %138 = vmatpush.msra.mxu0 0.0
    %139 = vmatpush.msra.mxu0 0.0
    %140 = vmatpush.msra.mxu0 0.0
    %141 = vmatpush.msra.mxu0 0.0
    %142 = vmatpush.msra.mxu0 0.0
    %143 = vmatpush.msra.mxu0 0.0
    %144 = vmatpush.msra.mxu0 0.0
    %145 = vmatpush.msra.mxu0 0.0
    %146 = vmatpush.msra.mxu0 0.0
    %147 = vmatpush.msra.mxu0 %v90
    %148 = vmatpush.msra.mxu0 %v89
    %149 = vmatmul.f32.gmra.mxu0 %v131
    %v150 = vpop.f32.mrf.mxu0
    %v151 = vadd.f32 %v127, %v150
    %152 = vdwg.mxu0
    %v153 = vmax.f32 %v151, 0.0
    %v155 = vperm.slane %v108, 0
    %157 = vmatpush.msra.mxu0 %v107
    %158 = vmatpush.msra.mxu0 %v106
    %159 = vmatpush.msra.mxu0 %v105
    %160 = vmatpush.msra.mxu0 %v104
    %161 = vmatpush.msra.mxu0 %v103
    %162 = vmatpush.msra.mxu0 %v102
    %163 = vmatpush.msra.mxu0 %v101
    %164 = vmatpush.msra.mxu0 %v100
    %165 = vmatpush.msra.mxu0 %v99
    %166 = vmatpush.msra.mxu0 %v98
    %167 = vmatpush.msra.mxu0 %v97
    %168 = vmatpush.msra.mxu0 %v96
    %169 = vmatpush.msra.mxu0 %v95
    %170 = vmatpush.msra.mxu0 %v94
    %171 = vmatpush.msra.mxu0 %v93
    %172 = vmatpush.msra.mxu0 %v92
    %173 = vmatmul.f32.gmra.mxu0 %v153
    %v174 = vpop.f32.mrf.mxu0
    %v175 = vadd.f32 %v155, %v174
    %176 = vdwg.mxu0
    %v177 = vmax.f32 %v175, 0.0
    %v178 = vadd.f32 %v177, %v153
    %v180 = vperm.slane %v125, 0
    %182 = vmatpush.msra.mxu0 %v124
    %183 = vmatpush.msra.mxu0 %v123
    %184 = vmatpush.msra.mxu0 %v122
    %185 = vmatpush.msra.mxu0 %v121
    %186 = vmatpush.msra.mxu0 %v120
    %187 = vmatpush.msra.mxu0 %v119
    %188 = vmatpush.msra.mxu0 %v118
    %189 = vmatpush.msra.mxu0 %v117
    %190 = vmatpush.msra.mxu0 %v116
    %191 = vmatpush.msra.mxu0 %v115
    %192 = vmatpush.msra.mxu0 %v114
    %193 = vmatpush.msra.mxu0 %v113
    %194 = vmatpush.msra.mxu0 %v112
    %195 = vmatpush.msra.mxu0 %v111
    %196 = vmatpush.msra.mxu0 %v110
    %197 = vmatpush.msra.mxu0 %v109
    %198 = vmatmul.f32.gmra.mxu0 %v178
    %v199 = vpop.f32.mrf.mxu0
    %v200 = vadd.f32 %v180, %v199
    %201 = vdwg.mxu0
    %vm202 = vcmask 138240
    %203 = vst.msk [vmem:[#allocation10] sm:$0xff] %vm202, %v200
    // Predicated region
    $region46: #{policy_forward.1} parent=1 // pred_check
      _
    $region47: #{policy_forward.1} parent=1 // pred_check_branch
      %205 = sbr.rel (0) target = $region49
    $region48: #{policy_forward.1} parent=1 // pred_region
      %207 = vsyncadd [#allocation4], 0
      %s209 = sshll.u32 [#allocation10], 4
      %s210 = int_to_ptr.vmem [resolvable:$true] %s209
      %s211 = sshll.u32 %s7, 4
      %s212 = int_to_ptr.hbm [resolvable:$true] %s211
      %214 = dma.vmem_to_hbm [thread:$0]  %s210, 128, %s212, [#allocation4]
    $region49: #{policy_forward.1} parent=1 // pred_fallthru
      _
    // Predicated region
    $region50: #{policy_forward.1} parent=1 // pred_check
      _
    $region51: #{policy_forward.1} parent=1 // pred_check_branch
      %216 = sbr.rel (0) target = $region53
    $region52: #{policy_forward.1} parent=1 // pred_region
      %218 = dma.done [#allocation4], 128
    $region53: #{policy_forward.1} parent=1 // pred_fallthru
      _
    %219 = vsyncpa [#allocation3], 1
    %220 = vsyncpa [#allocation6], 1
    %221 = vsyncpa [#allocation9], 1
    %222 = vsyncpa [#allocation4], 1

</llo_original>
